<compile_context>
chip_gen: v6e
topology: v6e:2x2x1
jax: 0.10.0
libtpu: 0.0.40
codegen_flags: <defaults>
</compile_context>

<pallas_src>
import functools

import jax
import jax.numpy as jnp
from jax.experimental import pallas as pl
from jax.experimental.pallas import tpu as pltpu


def _round_up(x, m):
    return ((x + m - 1) // m) * m


# --------------------------------------------------------------------------
# Pallas kernel
# --------------------------------------------------------------------------
def _deberta_emb_kernel(tok_ref, tab_ref, lnw_ref, lnb_ref, out_ref, *, eps):
    tm = tok_ref.shape[0]
    r_pad = tab_ref.shape[0]                 # padded V + P + T (multiple of 256)

    tok = tok_ref[...]                       # (tm, 4) int32: [id, V+pos, V+P+tt, mask bits]

    # 3-hot row selector: the three index ranges are disjoint, so a single
    # boolean OR chain + ONE cast replaces three f32 casts and two f32 adds.
    iota = jax.lax.broadcasted_iota(jnp.int32, (tm, r_pad), 1)
    sel = ((iota == tok[:, 0:1])
           | (iota == tok[:, 1:2])
           | (iota == tok[:, 2:3]))
    onehot = sel.astype(tab_ref.dtype)       # bf16: 0/1 exact -> exact row select

    # gather + add + embed_proj collapsed into ONE MXU matmul against the
    # pre-projected, K-padded bf16 fused table; accumulate in f32.
    h = jnp.dot(onehot, tab_ref[...], preferred_element_type=jnp.float32)  # (tm, H)

    # DebertaLayerNorm in f32: reuse the centered term, rsqrt on the EUP.
    mean = jnp.mean(h, axis=-1, keepdims=True)
    centered = h - mean
    var = jnp.mean(centered * centered, axis=-1, keepdims=True)
    y = lnw_ref[...] * (centered * jax.lax.rsqrt(var + eps)) + lnb_ref[...]

    # Attention-mask multiply (f32 mask bits were bit-packed into column 3).
    mask = pltpu.bitcast(tok, jnp.float32)[:, 3:4]
    out_ref[...] = y * mask


# --------------------------------------------------------------------------
# One-time parameter preparation (run at weight-load time, NOT per forward)
# --------------------------------------------------------------------------
def prepare_deberta_embedding_params(params, *, r_align=256):
    """Fold embed_proj into one concatenated, zero-K-padded, bf16 fused table.

    (we + pe + te) @ W == we@W + pe@W + te@W, so the concatenated [V+P+T, H]
    projected table turns gather + add + projection into a single 3-hot MXU
    matmul inside the kernel. This is the expensive host-side fold the perf
    review asked to hoist out of the steady-state forward path.
    """
    word = params["word_embeddings"].astype(jnp.float32)     # [V, E]
    pos = params["position_embeddings"].astype(jnp.float32)  # [P, E]
    tt = params["token_type_embeddings"].astype(jnp.float32) # [T, E]
    V, E = word.shape
    P, T = pos.shape[0], tt.shape[0]
    proj = params.get("embed_proj")
    if proj is None:                                          # embedding_size == hidden_size
        proj = jnp.eye(E, dtype=jnp.float32)
    proj = proj.astype(jnp.float32)                           # [E, H]
    H = proj.shape[1]

    R = V + P + T
    R_pad = _round_up(R, r_align)                             # MXU-tile aligned K
    fused = jnp.concatenate([word, pos, tt], axis=0) @ proj   # [R, H] f32
    fused = jnp.pad(fused, ((0, R_pad - R), (0, 0)))          # zero rows select nothing

    return {
        # bf16 table: row *selection* stays exact (0/1 exact in bf16); values
        # are bf16-quantized -> explicit precision choice, native MXU rate.
        "fused_table": fused.astype(jnp.bfloat16),            # [R_pad, H]
        "ln_weight": params["ln_weight"].reshape(1, H).astype(jnp.float32),
        "ln_bias": params["ln_bias"].reshape(1, H).astype(jnp.float32),
        "vocab_size": V,
        "num_positions": P,
        "num_token_types": T,
    }


# --------------------------------------------------------------------------
# Forward wrapper
# --------------------------------------------------------------------------
def deberta_embeddings(input_ids, token_type_ids, position_ids, mask, prepared,
                       *, eps=1e-7, tm=512):
    B, S = input_ids.shape
    N = B * S

    tab = prepared["fused_table"]
    R_pad, H = tab.shape
    V = prepared["vocab_size"]
    P = prepared["num_positions"]

    if position_ids is None:
        position_ids = jnp.broadcast_to(jnp.arange(S, dtype=jnp.int32), (B, S))
    if token_type_ids is None:
        token_type_ids = jnp.zeros((B, S), dtype=jnp.int32)
    if mask is None:
        mask = jnp.ones((B, S), dtype=jnp.float32)

    # Token tile: big (amortize the ~0.35us per-grid-step overhead), multiple
    # of 8, but capped so the grid has >= 2 steps whenever there are enough
    # tokens -- otherwise one of v7x's two TensorCores sits idle.
    tm_eff = min(tm, _round_up(N, 8))
    if N > 8:
        tm_eff = min(tm_eff, _round_up(-(-N // 2), 8))
    tm_eff = max(8, (tm_eff // 8) * 8)
    n_pad = _round_up(N, tm_eff)
    grid = (n_pad // tm_eff,)

    # Pack the four per-token scalars into one (N, 4) int32 array -> a single
    # small DMA per grid step (mask packed via f32 bit pattern).
    ids = input_ids.reshape(N).astype(jnp.int32)
    pos = position_ids.reshape(N).astype(jnp.int32) + V
    tts = token_type_ids.reshape(N).astype(jnp.int32) + V + P
    mbits = jax.lax.bitcast_convert_type(mask.reshape(N).astype(jnp.float32),
                                         jnp.int32)
    tok = jnp.stack([ids, pos, tts, mbits], axis=1)            # (N, 4) int32
    if n_pad != N:
        tok = jnp.pad(tok, ((0, n_pad - N), (0, 0)))           # padded rows: mask = 0.0f

    # Scoped-VMEM estimate; raise the limit only once we exceed v5e's 16 MiB
    # default (table single-buffered, tok/out double-buffered, onehot temp).
    vmem_est = (2 * tm_eff * 4 * 4                 # tok double-buffered
                + 2 * tm_eff * H * 4               # output double-buffered
                + 2 * tm_eff * R_pad * 2           # onehot temporaries (bf16)
                + 2 * R_pad * H * 2                # table (headroom for 2 bufs)
                + 4 * H * 4)                       # LN params
    cp_kwargs = dict(dimension_semantics=("parallel",))
    if vmem_est > 16 * 1024 * 1024:
        cp_kwargs["vmem_limit_bytes"] = min(2 * vmem_est, 96 * 1024 * 1024)

    def _call(single_buffer_invariants):
        # Grid-invariant operands (constant index_map) don't benefit from
        # double buffering; single-buffer them to halve their VMEM cost.
        inv = ({"pipeline_mode": pl.Buffered(1)}
               if single_buffer_invariants else {})
        return pl.pallas_call(
            functools.partial(_deberta_emb_kernel, eps=eps),
            out_shape=jax.ShapeDtypeStruct((n_pad, H), jnp.float32),
            grid_spec=pltpu.PrefetchScalarGridSpec(
                num_scalar_prefetch=0,
                grid=grid,
                in_specs=[
                    pl.BlockSpec((tm_eff, 4), lambda i: (i, 0)),        # packed tokens
                    pl.BlockSpec((R_pad, H), lambda i: (0, 0), **inv),  # fused table
                    pl.BlockSpec((1, H), lambda i: (0, 0), **inv),      # LN weight
                    pl.BlockSpec((1, H), lambda i: (0, 0), **inv),      # LN bias
                ],
                out_specs=pl.BlockSpec((tm_eff, H), lambda i: (i, 0)),  # lane-dense slab
            ),
            compiler_params=pltpu.CompilerParams(**cp_kwargs),
        )(tok, tab, prepared["ln_weight"], prepared["ln_bias"])

    try:
        out = _call(True)
    except Exception:
        # TODO(synk): some jax builds reject pl.Buffered(1); default buffering.
        out = _call(False)

    return out[:N].reshape(B, S, H)


# --------------------------------------------------------------------------
# Pure-JAX references
# --------------------------------------------------------------------------
def deberta_embeddings_ref(input_ids, token_type_ids, position_ids, mask,
                           params, *, eps=1e-7):
    """Mirrors the PyTorch forward in f32 (eval mode)."""
    we = params["word_embeddings"][input_ids]
    pe = params["position_embeddings"][position_ids]
    te = params["token_type_embeddings"][token_type_ids]
    h = (we + pe + te) @ params["embed_proj"]
    mean = jnp.mean(h, axis=-1, keepdims=True)
    var = jnp.mean((h - mean) ** 2, axis=-1, keepdims=True)
    h = (h - mean) / jnp.sqrt(var + eps)
    y = params["ln_weight"].reshape(-1) * h + params["ln_bias"].reshape(-1)
    return y * mask[..., None].astype(y.dtype)


def deberta_embeddings_ref_prepared(input_ids, token_type_ids, position_ids,
                                    mask, prepared, *, eps=1e-7):
    """Same math but gathering from the prepared bf16 fused table (isolates
    kernel correctness from the deliberate bf16 table quantization)."""
    V, P = prepared["vocab_size"], prepared["num_positions"]
    tab = prepared["fused_table"].astype(jnp.float32)
    h = tab[input_ids] + tab[position_ids + V] + tab[token_type_ids + V + P]
    mean = jnp.mean(h, axis=-1, keepdims=True)
    var = jnp.mean((h - mean) ** 2, axis=-1, keepdims=True)
    h = (h - mean) / jnp.sqrt(var + eps)
    y = prepared["ln_weight"][0] * h + prepared["ln_bias"][0]
    return y * mask[..., None].astype(y.dtype)


# --------------------------------------------------------------------------
# Main
# --------------------------------------------------------------------------
if __name__ == "__main__":
    # config: vocab_size=128, max_position_embeddings=16, type_vocab_size=2,
    #         embedding_size=64, hidden_size=128, layer_norm_eps=1e-7,
    #         pad_token_id=0, position_biased_input=True
    V, P, T, E, H = 128, 16, 2, 64, 128
    B, S = 2, 8
    eps = 1e-7

    key = jax.random.PRNGKey(0)
    k_w, k_p, k_t, k_proj, k_ids, k_mask = jax.random.split(key, 6)

    word_tab = 0.02 * jax.random.normal(k_w, (V, E), dtype=jnp.float32)
    word_tab = word_tab.at[0].set(0.0)  # padding_idx=0 row zeroed (nn.Embedding)
    pos_tab = 0.02 * jax.random.normal(k_p, (P, E), dtype=jnp.float32)
    tt_tab = 0.02 * jax.random.normal(k_t, (T, E), dtype=jnp.float32)
    proj_w = (1.0 / jnp.sqrt(E)) * jax.random.normal(k_proj, (E, H),
                                                     dtype=jnp.float32)
    ln_w = jnp.ones((1, H), dtype=jnp.float32)
    ln_b = jnp.zeros((1, H), dtype=jnp.float32)

    params = {
        "word_embeddings": word_tab,
        "position_embeddings": pos_tab,
        "token_type_embeddings": tt_tab,
        "embed_proj": proj_w,
        "ln_weight": ln_w,
        "ln_bias": ln_b,
    }

    input_ids = jax.random.randint(k_ids, (B, S), 0, V, dtype=jnp.int32)
    position_ids = jnp.broadcast_to(jnp.arange(S, dtype=jnp.int32), (B, S))
    token_type_ids = jnp.zeros((B, S), dtype=jnp.int32)
    mask = jnp.ones((B, S), dtype=jnp.float32).at[1, S - 2:].set(0.0)

    # One-time fold (weight-load time); steady-state forwards reuse `prepared`.
    prepared = prepare_deberta_embedding_params(params)
    prepared = jax.tree_util.tree_map(
        lambda x: jax.block_until_ready(x) if isinstance(x, jax.Array) else x,
        prepared)

    out = deberta_embeddings(input_ids, token_type_ids, position_ids, mask,
                             prepared, eps=eps)
    out = jax.block_until_ready(out)
    assert out.shape == (B, S, H)

    # Exact-path check: same bf16 fused table as the kernel -> tight tolerance.
    ref_bf16 = deberta_embeddings_ref_prepared(
        input_ids, token_type_ids, position_ids, mask, prepared, eps=eps)
    assert jnp.allclose(out, ref_bf16, atol=1e-4, rtol=1e-4), \
        "mismatch vs bf16-table reference"

    # Semantic check vs the f32 PyTorch-mirroring reference. The fused table
    # is deliberately stored in bf16 (exact row selection, values quantized),
    # so after unit-variance LayerNorm the expected deviation is ~bf16 eps.
    ref_f32 = deberta_embeddings_ref(input_ids, token_type_ids, position_ids,
                                     mask, params, eps=eps)
    assert jnp.allclose(out, ref_f32, atol=3e-2, rtol=0.0), \
        "mismatch vs f32 reference"

    print("KERNEL_OK")
</pallas_src>

<mosaic_0001>
module attributes {stable_mosaic.version = 11 : i64} {
  func.func @_deberta_emb_kernel(%arg0: i32, %arg1: memref<8x4xi32, #tpu.memory_space<vmem>>, %arg2: memref<256x128xbf16, #tpu.memory_space<vmem>>, %arg3: memref<1x128xf32, #tpu.memory_space<vmem>>, %arg4: memref<1x128xf32, #tpu.memory_space<vmem>>, %arg5: memref<8x128xf32, #tpu.memory_space<vmem>>) attributes {dimension_semantics = [#tpu.dimension_semantics<parallel>], iteration_bounds = array<i64: 2>, scalar_prefetch = 0 : i64, scratch_operands = 0 : i64, tpu.core_type = #tpu.core_type<tc>, window_params = [{transform_indices = @transform_0, window_bounds = array<i64: 8, 4>}, {pipeline_mode = #tpu.pipeline_mode<synchronous>, transform_indices = @transform_1, window_bounds = array<i64: 256, 128>}, {pipeline_mode = #tpu.pipeline_mode<synchronous>, transform_indices = @transform_2, window_bounds = array<i64: 1, 128>}, {pipeline_mode = #tpu.pipeline_mode<synchronous>, transform_indices = @transform_3, window_bounds = array<i64: 1, 128>}, {transform_indices = @transform_4, window_bounds = array<i64: 8, 128>}]} {
    %c0 = arith.constant 0 : index
    %c0_0 = arith.constant 0 : index
    %0 = vector.load %arg1[%c0, %c0_0] : memref<8x4xi32, #tpu.memory_space<vmem>>, vector<8x4xi32>
    %1 = tpu.iota {dimensions = array<i32: 1>} : vector<8x256xi32>
    %2 = vector.extract_strided_slice %0 {offsets = [0, 0], sizes = [8, 1], strides = [1, 1]} : vector<8x4xi32> to vector<8x1xi32>
    %3 = vector.broadcast %2 : vector<8x1xi32> to vector<8x256xi32>
    %4 = arith.cmpi eq, %1, %3 : vector<8x256xi32>
    %5 = vector.extract_strided_slice %0 {offsets = [0, 1], sizes = [8, 1], strides = [1, 1]} : vector<8x4xi32> to vector<8x1xi32>
    %6 = vector.broadcast %5 : vector<8x1xi32> to vector<8x256xi32>
    %7 = arith.cmpi eq, %1, %6 : vector<8x256xi32>
    %8 = arith.ori %4, %7 : vector<8x256xi1>
    %9 = vector.extract_strided_slice %0 {offsets = [0, 2], sizes = [8, 1], strides = [1, 1]} : vector<8x4xi32> to vector<8x1xi32>
    %10 = vector.broadcast %9 : vector<8x1xi32> to vector<8x256xi32>
    %11 = arith.cmpi eq, %1, %10 : vector<8x256xi32>
    %12 = arith.ori %8, %11 : vector<8x256xi1>
    %13 = arith.extui %12 : vector<8x256xi1> to vector<8x256xi32>
    %14 = arith.sitofp %13 : vector<8x256xi32> to vector<8x256xf32>
    %15 = arith.truncf %14 : vector<8x256xf32> to vector<8x256xbf16>
    %c0_1 = arith.constant 0 : index
    %c0_2 = arith.constant 0 : index
    %16 = vector.load %arg2[%c0_1, %c0_2] : memref<256x128xbf16, #tpu.memory_space<vmem>>, vector<256x128xbf16>
    %cst = arith.constant dense<0.000000e+00> : vector<8x128xf32>
    %17 = tpu.matmul %15, %16, %cst {dimension_numbers = #tpu.dot_dimension_numbers<[1], [0], [0], [1], [0, 0, 1, 1], [], []>} : vector<8x256xbf16>, vector<256x128xbf16>, vector<8x128xf32> -> vector<8x128xf32>
    %cst_3 = arith.constant dense<0.000000e+00> : vector<8xf32>
    %18 = vector.multi_reduction <add>, %17, %cst_3 [1] : vector<8x128xf32> to vector<8xf32>
    %19 = vector.shape_cast %18 : vector<8xf32> to vector<8x1xf32>
    %cst_4 = arith.constant 1.280000e+02 : f32
    %20 = vector.broadcast %cst_4 : f32 to vector<8x1xf32>
    %21 = arith.divf %19, %20 : vector<8x1xf32>
    %22 = vector.broadcast %21 : vector<8x1xf32> to vector<8x128xf32>
    %23 = arith.subf %17, %22 : vector<8x128xf32>
    %24 = arith.mulf %23, %23 : vector<8x128xf32>
    %cst_5 = arith.constant dense<0.000000e+00> : vector<8xf32>
    %25 = vector.multi_reduction <add>, %24, %cst_5 [1] : vector<8x128xf32> to vector<8xf32>
    %26 = vector.shape_cast %25 : vector<8xf32> to vector<8x1xf32>
    %cst_6 = arith.constant 1.280000e+02 : f32
    %27 = vector.broadcast %cst_6 : f32 to vector<8x1xf32>
    %28 = arith.divf %26, %27 : vector<8x1xf32>
    %c0_7 = arith.constant 0 : index
    %c0_8 = arith.constant 0 : index
    %29 = vector.load %arg3[%c0_7, %c0_8] : memref<1x128xf32, #tpu.memory_space<vmem>>, vector<1x128xf32>
    %cst_9 = arith.constant 1.000000e-07 : f32
    %30 = vector.broadcast %cst_9 : f32 to vector<8x1xf32>
    %31 = arith.addf %28, %30 : vector<8x1xf32>
    %32 = math.rsqrt %31 : vector<8x1xf32>
    %33 = vector.broadcast %32 : vector<8x1xf32> to vector<8x128xf32>
    %34 = arith.mulf %23, %33 : vector<8x128xf32>
    %35 = vector.broadcast %29 : vector<1x128xf32> to vector<8x128xf32>
    %36 = arith.mulf %35, %34 : vector<8x128xf32>
    %c0_10 = arith.constant 0 : index
    %c0_11 = arith.constant 0 : index
    %37 = vector.load %arg4[%c0_10, %c0_11] : memref<1x128xf32, #tpu.memory_space<vmem>>, vector<1x128xf32>
    %38 = vector.broadcast %37 : vector<1x128xf32> to vector<8x128xf32>
    %39 = arith.addf %36, %38 : vector<8x128xf32>
    %40 = tpu.bitcast %0 : vector<8x4xi32> -> vector<8x4xf32>
    %41 = vector.extract_strided_slice %40 {offsets = [0, 3], sizes = [8, 1], strides = [1, 1]} : vector<8x4xf32> to vector<8x1xf32>
    %42 = vector.broadcast %41 : vector<8x1xf32> to vector<8x128xf32>
    %43 = arith.mulf %39, %42 : vector<8x128xf32>
    %c0_12 = arith.constant 0 : index
    %c0_13 = arith.constant 0 : index
    %44 = vector.load %arg5[%c0_12, %c0_13] : memref<8x128xf32, #tpu.memory_space<vmem>>, vector<8x128xf32>
    tpu.vector_store %arg5[%c0_12, %c0_13], %43 {strides = array<i32>} : memref<8x128xf32, #tpu.memory_space<vmem>>, vector<8x128xf32>,
    return
  }
  func.func @transform_0(%arg0: i32) -> (i32, i32) {
    %c0_i32 = arith.constant 0 : i32
    %c0_i32_0 = arith.constant 0 : i32
    return %arg0, %c0_i32 : i32, i32
  }
  func.func @transform_1(%arg0: i32) -> (i32, i32) {
    %c0_i32 = arith.constant 0 : i32
    %c0_i32_0 = arith.constant 0 : i32
    %c0_i32_1 = arith.constant 0 : i32
    return %c0_i32, %c0_i32_0 : i32, i32
  }
  func.func @transform_2(%arg0: i32) -> (i32, i32) {
    %c0_i32 = arith.constant 0 : i32
    %c0_i32_0 = arith.constant 0 : i32
    %c0_i32_1 = arith.constant 0 : i32
    return %c0_i32, %c0_i32_0 : i32, i32
  }
  func.func @transform_3(%arg0: i32) -> (i32, i32) {
    %c0_i32 = arith.constant 0 : i32
    %c0_i32_0 = arith.constant 0 : i32
    %c0_i32_1 = arith.constant 0 : i32
    return %c0_i32, %c0_i32_0 : i32, i32
  }
  func.func @transform_4(%arg0: i32) -> (i32, i32) {
    %c0_i32 = arith.constant 0 : i32
    %c0_i32_0 = arith.constant 0 : i32
    return %arg0, %c0_i32 : i32, i32
  }
}

module attributes {stable_mosaic.version = 11 : i64} {
  func.func @_deberta_emb_kernel(%arg0: i32, %arg1: memref<8x4xi32, #tpu.memory_space<vmem>>, %arg2: memref<256x128xbf16, #tpu.memory_space<vmem>>, %arg3: memref<1x128xf32, #tpu.memory_space<vmem>>, %arg4: memref<1x128xf32, #tpu.memory_space<vmem>>, %arg5: memref<8x128xf32, #tpu.memory_space<vmem>>) attributes {dimension_semantics = [#tpu.dimension_semantics<parallel>], iteration_bounds = array<i64: 2>, scalar_prefetch = 0 : i64, scratch_operands = 0 : i64, tpu.core_type = #tpu.core_type<tc>, window_params = [{transform_indices = @transform_0, window_bounds = array<i64: 8, 4>}, {pipeline_mode = #tpu.pipeline_mode<synchronous>, transform_indices = @transform_1, window_bounds = array<i64: 256, 128>}, {pipeline_mode = #tpu.pipeline_mode<synchronous>, transform_indices = @transform_2, window_bounds = array<i64: 1, 128>}, {pipeline_mode = #tpu.pipeline_mode<synchronous>, transform_indices = @transform_3, window_bounds = array<i64: 1, 128>}, {transform_indices = @transform_4, window_bounds = array<i64: 8, 128>}]} {
    %c0 = arith.constant 0 : index
    %c0_0 = arith.constant 0 : index
    %0 = vector.load %arg1[%c0, %c0_0] : memref<8x4xi32, #tpu.memory_space<vmem>>, vector<8x4xi32>
    %1 = tpu.iota {dimensions = array<i32: 1>} : vector<8x256xi32>
    %2 = vector.extract_strided_slice %0 {offsets = [0, 0], sizes = [8, 1], strides = [1, 1]} : vector<8x4xi32> to vector<8x1xi32>
    %3 = vector.broadcast %2 : vector<8x1xi32> to vector<8x256xi32>
    %4 = arith.cmpi eq, %1, %3 : vector<8x256xi32>
    %5 = vector.extract_strided_slice %0 {offsets = [0, 1], sizes = [8, 1], strides = [1, 1]} : vector<8x4xi32> to vector<8x1xi32>
    %6 = vector.broadcast %5 : vector<8x1xi32> to vector<8x256xi32>
    %7 = arith.cmpi eq, %1, %6 : vector<8x256xi32>
    %8 = arith.ori %4, %7 : vector<8x256xi1>
    %9 = vector.extract_strided_slice %0 {offsets = [0, 2], sizes = [8, 1], strides = [1, 1]} : vector<8x4xi32> to vector<8x1xi32>
    %10 = vector.broadcast %9 : vector<8x1xi32> to vector<8x256xi32>
    %11 = arith.cmpi eq, %1, %10 : vector<8x256xi32>
    %12 = arith.ori %8, %11 : vector<8x256xi1>
    %13 = arith.extui %12 : vector<8x256xi1> to vector<8x256xi32>
    %14 = arith.sitofp %13 : vector<8x256xi32> to vector<8x256xf32>
    %15 = arith.truncf %14 : vector<8x256xf32> to vector<8x256xbf16>
    %c0_1 = arith.constant 0 : index
    %c0_2 = arith.constant 0 : index
    %16 = vector.load %arg2[%c0_1, %c0_2] : memref<256x128xbf16, #tpu.memory_space<vmem>>, vector<256x128xbf16>
    %cst = arith.constant dense<0.000000e+00> : vector<8x128xf32>
    %17 = tpu.matmul %15, %16, %cst {dimension_numbers = #tpu.dot_dimension_numbers<[1], [0], [0], [1], [0, 0, 1, 1], [], []>} : vector<8x256xbf16>, vector<256x128xbf16>, vector<8x128xf32> -> vector<8x128xf32>
    %cst_3 = arith.constant dense<0.000000e+00> : vector<8xf32>
    %18 = vector.multi_reduction <add>, %17, %cst_3 [1] : vector<8x128xf32> to vector<8xf32>
    %19 = vector.shape_cast %18 : vector<8xf32> to vector<8x1xf32>
    %cst_4 = arith.constant 1.280000e+02 : f32
    %20 = vector.broadcast %cst_4 : f32 to vector<8x1xf32>
    %21 = arith.divf %19, %20 : vector<8x1xf32>
    %22 = vector.broadcast %21 : vector<8x1xf32> to vector<8x128xf32>
    %23 = arith.subf %17, %22 : vector<8x128xf32>
    %24 = arith.mulf %23, %23 : vector<8x128xf32>
    %cst_5 = arith.constant dense<0.000000e+00> : vector<8xf32>
    %25 = vector.multi_reduction <add>, %24, %cst_5 [1] : vector<8x128xf32> to vector<8xf32>
    %26 = vector.shape_cast %25 : vector<8xf32> to vector<8x1xf32>
    %cst_6 = arith.constant 1.280000e+02 : f32
    %27 = vector.broadcast %cst_6 : f32 to vector<8x1xf32>
    %28 = arith.divf %26, %27 : vector<8x1xf32>
    %c0_7 = arith.constant 0 : index
    %c0_8 = arith.constant 0 : index
    %29 = vector.load %arg3[%c0_7, %c0_8] : memref<1x128xf32, #tpu.memory_space<vmem>>, vector<1x128xf32>
    %cst_9 = arith.constant 1.000000e-07 : f32
    %30 = vector.broadcast %cst_9 : f32 to vector<8x1xf32>
    %31 = arith.addf %28, %30 : vector<8x1xf32>
    %32 = math.rsqrt %31 : vector<8x1xf32>
    %33 = vector.broadcast %32 : vector<8x1xf32> to vector<8x128xf32>
    %34 = arith.mulf %23, %33 : vector<8x128xf32>
    %35 = vector.broadcast %29 : vector<1x128xf32> to vector<8x128xf32>
    %36 = arith.mulf %35, %34 : vector<8x128xf32>
    %c0_10 = arith.constant 0 : index
    %c0_11 = arith.constant 0 : index
    %37 = vector.load %arg4[%c0_10, %c0_11] : memref<1x128xf32, #tpu.memory_space<vmem>>, vector<1x128xf32>
    %38 = vector.broadcast %37 : vector<1x128xf32> to vector<8x128xf32>
    %39 = arith.addf %36, %38 : vector<8x128xf32>
    %40 = tpu.bitcast %0 : vector<8x4xi32> -> vector<8x4xf32>
    %41 = vector.extract_strided_slice %40 {offsets = [0, 3], sizes = [8, 1], strides = [1, 1]} : vector<8x4xf32> to vector<8x1xf32>
    %42 = vector.broadcast %41 : vector<8x1xf32> to vector<8x128xf32>
    %43 = arith.mulf %39, %42 : vector<8x128xf32>
    %c0_12 = arith.constant 0 : index
    %c0_13 = arith.constant 0 : index
    %44 = vector.load %arg5[%c0_12, %c0_13] : memref<8x128xf32, #tpu.memory_space<vmem>>, vector<8x128xf32>
    tpu.vector_store %arg5[%c0_12, %c0_13], %43 {strides = array<i32>} : memref<8x128xf32, #tpu.memory_space<vmem>>, vector<8x128xf32>,
    return
  }
  func.func @transform_0(%arg0: i32) -> (i32, i32) {
    %c0_i32 = arith.constant 0 : i32
    %c0_i32_0 = arith.constant 0 : i32
    return %arg0, %c0_i32 : i32, i32
  }
  func.func @transform_1(%arg0: i32) -> (i32, i32) {
    %c0_i32 = arith.constant 0 : i32
    %c0_i32_0 = arith.constant 0 : i32
    %c0_i32_1 = arith.constant 0 : i32
    return %c0_i32, %c0_i32_0 : i32, i32
  }
  func.func @transform_2(%arg0: i32) -> (i32, i32) {
    %c0_i32 = arith.constant 0 : i32
    %c0_i32_0 = arith.constant 0 : i32
    %c0_i32_1 = arith.constant 0 : i32
    return %c0_i32, %c0_i32_0 : i32, i32
  }
  func.func @transform_3(%arg0: i32) -> (i32, i32) {
    %c0_i32 = arith.constant 0 : i32
    %c0_i32_0 = arith.constant 0 : i32
    %c0_i32_1 = arith.constant 0 : i32
    return %c0_i32, %c0_i32_0 : i32, i32
  }
  func.func @transform_4(%arg0: i32) -> (i32, i32) {
    %c0_i32 = arith.constant 0 : i32
    %c0_i32_0 = arith.constant 0 : i32
    return %arg0, %c0_i32 : i32, i32
  }
}

</mosaic_0001>

<llo_original>
// kernel: tpu_custom_call.1
$region0: #{tpu_custom_call.1}
  #allocation0 [shape = 'u32[]', space=smem, size = 0x4, offset = 0x4, fixed_abs, tag = 'smem constant byte address 0x4 - core index']
  #allocation1 [shape = 'u32[144,128]{1,0:T(1,128)}', space=vmem, size = 0x12000, scoped, tag = 'internal scratch']
  %s0 = inlined_call_operand.vmem [shape: s32[16,4], index: 0, kind: input, shape index: {}]
  %s1 = inlined_call_operand.hbm [shape: bf16[256,128], index: 1, kind: input, shape index: {}]
  %s2 = inlined_call_operand.vmem [shape: f32[1,128], index: 2, kind: input, shape index: {}]
  %s3 = inlined_call_operand.vmem [shape: f32[1,128], index: 3, kind: input, shape index: {}]
  %s4 = inlined_call_operand.hbm [shape: f32[16,128], index: 4, kind: output, shape index: {}]
  %s5 = sld [smem:[#allocation0]]
  $region53: #{tpu_custom_call.1} parent=0
    _
  %s7 = ssub.s32 1, %s5
  %s8 = scalar_select 0, %s7, %s5
  $region1: #{tpu_custom_call.1} parent=0
    #allocation2 [shape = 'u8[65536]{0}', space=vmem, size = 0x10000, scoped, tag = 'input window, operand 1, single buffered']
    #allocation3 [shape = 's32[2]{0}', space=sflag, size = 0x8, scoped, tag = 'scoped memory for tpu_custom_call.1']
    #allocation4 [shape = 's32[2]{0}', space=sflag, size = 0x8, scoped, tag = 'scoped memory for tpu_custom_call.1']
    #allocation5 [shape = 'u8[8192]{0}', space=vmem, size = 0x2000, scoped, tag = 'output window, operand 0']
    %9 = vsyncpa [#allocation3], 0
    %10 = vsyncpa [#allocation4], 0
    %s11 = scalar_lea.sflag [#allocation4], 1
    %12 = vsyncpa %s11, 0
    loop: start=0, step=1, limit=4
    $region2: #{tpu_custom_call.1} parent=1 // loop_pre_header
      _
    $region3: #{tpu_custom_call.1} parent=1 // loop_header
      %s14 = sphi 0, %s18
      %p15 = scmp.ge.s32.totalorder %s14, 4
      %s24 = sphi 0, %s26
      %s27 = sphi 0, %s24
      %s28 = sphi 0, %s27
      %s44 = sphi 0, %s28
      %s48 = sphi 0, %s48
      %s50 = sphi 0, %s48
      %s51 = sphi 0, %s50
      %s65 = sphi 0, %s51
      %s69 = sphi 0, %s69
      %s71 = sphi 0, %s69
      %s72 = sphi 0, %s71
      %s86 = sphi 0, %s72
      %s90 = sphi 0, %s90
      %s92 = sphi 0, %s90
      %s93 = sphi 0, %s92
      %s107 = sphi 0, %s93
      %s113 = sphi 0, %s115
      %s116 = sphi 0, %s113
      %s117 = sphi 0, %s116
      %s133 = sphi 0, %s117
    $region4: #{tpu_custom_call.1} parent=1 // loop_header_branch
      %17 = sbr.rel (%p15) target = $region8
    $region5: #{tpu_custom_call.1} parent=1 // loop_body
      %s19 = ssub.s32 %s14, 1
      %s20 = ssub.s32 %s14, 2
      %s21 = sadd.s32 %s14, 1
      %s22 = ssub.s32 %s14, %s21
      %p23 = scmp.eq.s32.totalorder %s22, 0
      %s25 = sadd.s32 %s24, 1
      %s26 = scalar_select %p23, %s24, %s25
      %p29 = pneg %p23
      %p30 = scmp.eq.s32.totalorder %s14, 1
      %p31 = por %p29, %p30
      %p32 = scmp.ne.s32.totalorder %s24, %s27
      %p33 = scmp.eq.s32.totalorder %s14, 0
      %p34 = por %p32, %p33
      %p35 = scmp.ne.s32.totalorder %s24, %s27
      %p36 = scmp.eq.s32.totalorder %s19, 1
      %p37 = por %p35, %p36
      %p38 = scmp.ne.s32.totalorder %s27, %s28
      %p39 = scmp.eq.s32.totalorder %s19, 0
      %p40 = por %p38, %p39
      %p41 = scmp.ne.s32.totalorder %s27, %s28
      %p42 = scmp.eq.s32.totalorder %s20, 1
      %p43 = por %p41, %p42
      %p45 = scmp.ne.s32.totalorder %s28, %s44
      %p46 = scmp.eq.s32.totalorder %s20, 0
      %p47 = por %p45, %p46
      %s49 = sadd.s32 %s48, 1
      %p52 = scmp.eq.s32.totalorder %s14, 1
      %p53 = scmp.ne.s32.totalorder %s48, %s50
      %p54 = scmp.eq.s32.totalorder %s14, 0
      %p55 = por %p53, %p54
      %p56 = scmp.ne.s32.totalorder %s48, %s50
      %p57 = scmp.eq.s32.totalorder %s19, 1
      %p58 = por %p56, %p57
      %p59 = scmp.ne.s32.totalorder %s50, %s51
      %p60 = scmp.eq.s32.totalorder %s19, 0
      %p61 = por %p59, %p60
      %p62 = scmp.ne.s32.totalorder %s50, %s51
      %p63 = scmp.eq.s32.totalorder %s20, 1
      %p64 = por %p62, %p63
      %p66 = scmp.ne.s32.totalorder %s51, %s65
      %p67 = scmp.eq.s32.totalorder %s20, 0
      %p68 = por %p66, %p67
      %s70 = sadd.s32 %s69, 1
      %p73 = scmp.eq.s32.totalorder %s14, 1
      %p74 = scmp.ne.s32.totalorder %s69, %s71
      %p75 = scmp.eq.s32.totalorder %s14, 0
      %p76 = por %p74, %p75
      %p77 = scmp.ne.s32.totalorder %s69, %s71
      %p78 = scmp.eq.s32.totalorder %s19, 1
      %p79 = por %p77, %p78
      %p80 = scmp.ne.s32.totalorder %s71, %s72
      %p81 = scmp.eq.s32.totalorder %s19, 0
      %p82 = por %p80, %p81
      %p83 = scmp.ne.s32.totalorder %s71, %s72
      %p84 = scmp.eq.s32.totalorder %s20, 1
      %p85 = por %p83, %p84
      %p87 = scmp.ne.s32.totalorder %s72, %s86
      %p88 = scmp.eq.s32.totalorder %s20, 0
      %p89 = por %p87, %p88
      %s91 = sadd.s32 %s90, 1
      %p94 = scmp.eq.s32.totalorder %s14, 1
      %p95 = scmp.ne.s32.totalorder %s90, %s92
      %p96 = scmp.eq.s32.totalorder %s14, 0
      %p97 = por %p95, %p96
      %p98 = scmp.ne.s32.totalorder %s90, %s92
      %p99 = scmp.eq.s32.totalorder %s19, 1
      %p100 = por %p98, %p99
      %p101 = scmp.ne.s32.totalorder %s92, %s93
      %p102 = scmp.eq.s32.totalorder %s19, 0
      %p103 = por %p101, %p102
      %p104 = scmp.ne.s32.totalorder %s92, %s93
      %p105 = scmp.eq.s32.totalorder %s20, 1
      %p106 = por %p104, %p105
      %p108 = scmp.ne.s32.totalorder %s93, %s107
      %p109 = scmp.eq.s32.totalorder %s20, 0
      %p110 = por %p108, %p109
      %s111 = ssub.s32 %s14, %s21
      %p112 = scmp.eq.s32.totalorder %s111, 0
      %s114 = sadd.s32 %s113, 1
      %s115 = scalar_select %p112, %s113, %s114
      %p118 = pneg %p112
      %p119 = scmp.eq.s32.totalorder %s14, 1
      %p120 = por %p118, %p119
      %p121 = scmp.ne.s32.totalorder %s113, %s116
      %p122 = scmp.eq.s32.totalorder %s14, 0
      %p123 = por %p121, %p122
      %p124 = scmp.ne.s32.totalorder %s113, %s116
      %p125 = scmp.eq.s32.totalorder %s19, 1
      %p126 = por %p124, %p125
      %p127 = scmp.ne.s32.totalorder %s116, %s117
      %p128 = scmp.eq.s32.totalorder %s19, 0
      %p129 = por %p127, %p128
      %p130 = scmp.ne.s32.totalorder %s116, %s117
      %p131 = scmp.eq.s32.totalorder %s20, 1
      %p132 = por %p130, %p131
      %p134 = scmp.ne.s32.totalorder %s117, %s133
      %p135 = scmp.eq.s32.totalorder %s20, 0
      %p136 = por %p134, %p135
      %p137 = scmp.le.s32.totalorder 1, %s14
      %p138 = scmp.lt.s32.totalorder %s14, 3
      %p139 = pnand %p137, %p138
      %p140 = pneg %p139
      // Predicated region
      $region9: #{tpu_custom_call.1} parent=5 // pred_check
        _
      $region10: #{tpu_custom_call.1} parent=5 // pred_check_branch
        %142 = sbr.rel (%p139) target = $region12
      $region11: #{tpu_custom_call.1} parent=5 // pred_region
        %s143 = ssub.s32 %s14, 1
        // Predicated region
        $region13: #{tpu_custom_call.1} parent=11 // pred_check
          %p144 = pneg %p61
        $region14: #{tpu_custom_call.1} parent=11 // pred_check_branch
          %146 = sbr.rel (%p144) target = $region16
        $region15: #{tpu_custom_call.1} parent=11 // pred_region
          %s148 = ssub.s32 2048, 2048
          %149 = vsyncadd [#allocation3], %s148
          %s150 = sshll.u32 [#allocation2], 4
          %s151 = int_to_ptr.vmem [resolvable:$true] %s150
          %156 = dma.hbm_to_vmem [thread:$0]  %s1, 2048, %s151, [#allocation3], 64, 64, 4
        $region16: #{tpu_custom_call.1} parent=11 // pred_fallthru
          _
        // Predicated region
        $region17: #{tpu_custom_call.1} parent=11 // pred_check
          %p157 = pneg %p82
        $region18: #{tpu_custom_call.1} parent=11 // pred_check_branch
          %159 = sbr.rel (%p157) target = $region20
        $region19: #{tpu_custom_call.1} parent=11 // pred_region
          _
        $region20: #{tpu_custom_call.1} parent=11 // pred_fallthru
          _
        // Predicated region
        $region21: #{tpu_custom_call.1} parent=11 // pred_check
          %p160 = pneg %p103
        $region22: #{tpu_custom_call.1} parent=11 // pred_check_branch
          %162 = sbr.rel (%p160) target = $region24
        $region23: #{tpu_custom_call.1} parent=11 // pred_region
          _
        $region24: #{tpu_custom_call.1} parent=11 // pred_fallthru
          _
      $region12: #{tpu_custom_call.1} parent=5 // pred_fallthru
        _
      %p163 = scmp.lt.s32.totalorder %s14, 2
      // Predicated region
      $region25: #{tpu_custom_call.1} parent=5 // pred_check
        %p164 = pneg %p163
      $region26: #{tpu_custom_call.1} parent=5 // pred_check_branch
        %166 = sbr.rel (%p164) target = $region28
      $region27: #{tpu_custom_call.1} parent=5 // pred_region
        // Predicated region
        $region29: #{tpu_custom_call.1} parent=27 // pred_check
          %p167 = pneg %p34
        $region30: #{tpu_custom_call.1} parent=27 // pred_check_branch
          %169 = sbr.rel (%p167) target = $region32
        $region31: #{tpu_custom_call.1} parent=27 // pred_region
          %p170 = scmp.lt.s32.totalorder %s14, 1
          %s171 = scalar_select %p170, %s14, 1
          %s172 = smul.addr %s171, 8
          %s173 = scalar_lea.vmem %s0, %s172
        $region32: #{tpu_custom_call.1} parent=27 // pred_fallthru
          _
      $region28: #{tpu_custom_call.1} parent=5 // pred_fallthru
        _
      %p174 = scmp.le.s32.totalorder 1, %s14
      %p175 = scmp.lt.s32.totalorder %s14, 3
      %p176 = pnand %p174, %p175
      %p177 = pneg %p176
      // Predicated region
      $region33: #{tpu_custom_call.1} parent=5 // pred_check
        _
      $region34: #{tpu_custom_call.1} parent=5 // pred_check_branch
        %179 = sbr.rel (%p176) target = $region36
      $region35: #{tpu_custom_call.1} parent=5 // pred_region
        %s180 = ssub.s32 %s14, 1
        // Predicated region
        $region37: #{tpu_custom_call.1} parent=35 // pred_check
          %p181 = pneg %p61
        $region38: #{tpu_custom_call.1} parent=35 // pred_check_branch
          %183 = sbr.rel (%p181) target = $region40
        $region39: #{tpu_custom_call.1} parent=35 // pred_region
          %184 = dma.done [#allocation3], 2048
        $region40: #{tpu_custom_call.1} parent=35 // pred_fallthru
          _
        %p185 = scmp.lt.s32.totalorder %s19, 1
        %s186 = scalar_select %p185, %s19, 1
        %s187 = smul.addr %s186, 8
        %s188 = scalar_lea.vmem %s0, %s187
        %p189 = pneg %p40
        %p190 = pneg %p37
        %p191 = pneg %p61
        %p192 = pneg %p58
        %p193 = pneg %p82
        %p194 = pneg %p79
        %p195 = pneg %p103
        %p196 = pneg %p100
        %p197 = pneg %p129
        %p198 = pneg %p126
        %s199 = sand.u32 %s116, 1
        %s200 = scalar_lea.sflag [#allocation4], %s199
        %s201 = sand.u32 %s116, 1
        %s202 = smul.addr %s201, 8
        %s203 = scalar_lea.vmem [#allocation5], %s202
        %p204 = scmp.lt.s32.totalorder %s19, 1
        %s205 = scalar_select %p204, %s19, 1
        %s206 = smul.addr %s205, 8
        %s207 = scalar_lea.vmem %s0, %s206
        %v209 = vld [vmem:[%s207] sm:$0xff]
        %v210 = vlaneseq
        %v211 = vand.u32 %v210, 127
        %v212 = vadd.s32 %v211, 128
        %213 = vset.pattern.permute.xlu0 0
        %214 = vperm.xlu0 %213, %v209
        %v215 = vpop.permute.xlu0 %214
        %vm216 = vcmp.eq.s32.totalorder %v211, %v215
        %vm217 = vcmp.eq.s32.totalorder %v212, %v215
        %218 = vset.pattern.permute.xlu0 1
        %219 = vperm.xlu0 %218, %v209
        %v220 = vpop.permute.xlu0 %219
        %vm221 = vcmp.eq.s32.totalorder %v211, %v220
        %vm222 = vcmp.eq.s32.totalorder %v212, %v220
        %vm223 = vmor %vm216, %vm221
        %vm224 = vmor %vm217, %vm222
        %225 = vset.pattern.permute.xlu0 2
        %226 = vperm.xlu0 %225, %v209
        %v227 = vpop.permute.xlu0 %226
        %vm228 = vcmp.eq.s32.totalorder %v211, %v227
        %vm229 = vcmp.eq.s32.totalorder %v212, %v227
        %vm230 = vmor %vm223, %vm228
        %vm231 = vmor %vm224, %vm229
        %v232 = vsel %vm230, 1, 0
        %v233 = vsel %vm231, 1, 0
        %v234 = vcvt.s32.f32 %v232
        %v235 = vcvt.s32.f32 %v233
        %v236 = vpack.c.bf16 %v234, %v234
        %v237 = vpack.c.bf16 %v235, %v235
        %v238 = vld [vmem:[#allocation2] sm:$0xf]
        %v239 = vld [vmem:[#allocation2 + $0x4] sm:$0xf]
        %v240 = vld [vmem:[#allocation2 + $0x8] sm:$0xf]
        %v241 = vld [vmem:[#allocation2 + $0xc] sm:$0xf]
        %v242 = vld [vmem:[#allocation2 + $0x10] sm:$0xf]
        %v243 = vld [vmem:[#allocation2 + $0x14] sm:$0xf]
        %v244 = vld [vmem:[#allocation2 + $0x18] sm:$0xf]
        %v245 = vld [vmem:[#allocation2 + $0x1c] sm:$0xf]
        %v246 = vld [vmem:[#allocation2 + $0x20] sm:$0xf]
        %v247 = vld [vmem:[#allocation2 + $0x24] sm:$0xf]
        %v248 = vld [vmem:[#allocation2 + $0x28] sm:$0xf]
        %v249 = vld [vmem:[#allocation2 + $0x2c] sm:$0xf]
        %v250 = vld [vmem:[#allocation2 + $0x30] sm:$0xf]
        %v251 = vld [vmem:[#allocation2 + $0x34] sm:$0xf]
        %v252 = vld [vmem:[#allocation2 + $0x38] sm:$0xf]
        %v253 = vld [vmem:[#allocation2 + $0x3c] sm:$0xf]
        %v254 = vld [vmem:[#allocation2 + $0x40] sm:$0xf]
        %v255 = vld [vmem:[#allocation2 + $0x44] sm:$0xf]
        %v256 = vld [vmem:[#allocation2 + $0x48] sm:$0xf]
        %v257 = vld [vmem:[#allocation2 + $0x4c] sm:$0xf]
        %v258 = vld [vmem:[#allocation2 + $0x50] sm:$0xf]
        %v259 = vld [vmem:[#allocation2 + $0x54] sm:$0xf]
        %v260 = vld [vmem:[#allocation2 + $0x58] sm:$0xf]
        %v261 = vld [vmem:[#allocation2 + $0x5c] sm:$0xf]
        %v262 = vld [vmem:[#allocation2 + $0x60] sm:$0xf]
        %v263 = vld [vmem:[#allocation2 + $0x64] sm:$0xf]
        %v264 = vld [vmem:[#allocation2 + $0x68] sm:$0xf]
        %v265 = vld [vmem:[#allocation2 + $0x6c] sm:$0xf]
        %v266 = vld [vmem:[#allocation2 + $0x70] sm:$0xf]
        %v267 = vld [vmem:[#allocation2 + $0x74] sm:$0xf]
        %v268 = vld [vmem:[#allocation2 + $0x78] sm:$0xf]
        %v269 = vld [vmem:[#allocation2 + $0x7c] sm:$0xf]
        %v302 = vunpack.c.l.b16 %v238
        %v303 = vunpack.c.l.b16 %v239
        %v304 = vunpack.c.l.b16 %v240
        %v305 = vunpack.c.l.b16 %v241
        %v306 = vunpack.c.l.b16 %v242
        %v307 = vunpack.c.l.b16 %v243
        %v308 = vunpack.c.l.b16 %v244
        %v309 = vunpack.c.l.b16 %v245
        %v310 = vunpack.c.l.b16 %v246
        %v311 = vunpack.c.l.b16 %v247
        %v312 = vunpack.c.l.b16 %v248
        %v313 = vunpack.c.l.b16 %v249
        %v314 = vunpack.c.l.b16 %v250
        %v315 = vunpack.c.l.b16 %v251
        %v316 = vunpack.c.l.b16 %v252
        %v317 = vunpack.c.l.b16 %v253
        %v318 = vunpack.c.l.b16 %v254
        %v319 = vunpack.c.l.b16 %v255
        %v320 = vunpack.c.l.b16 %v256
        %v321 = vunpack.c.l.b16 %v257
        %v322 = vunpack.c.l.b16 %v258
        %v323 = vunpack.c.l.b16 %v259
        %v324 = vunpack.c.l.b16 %v260
        %v325 = vunpack.c.l.b16 %v261
        %v326 = vunpack.c.l.b16 %v262
        %v327 = vunpack.c.l.b16 %v263
        %v328 = vunpack.c.l.b16 %v264
        %v329 = vunpack.c.l.b16 %v265
        %v330 = vunpack.c.l.b16 %v266
        %v331 = vunpack.c.l.b16 %v267
        %v332 = vunpack.c.l.b16 %v268
        %v333 = vunpack.c.l.b16 %v269
        %v334 = vpack.c.b16 %v303, %v302
        %v335 = vpack.c.b16 %v305, %v304
        %v336 = vpack.c.b16 %v307, %v306
        %v337 = vpack.c.b16 %v309, %v308
        %v338 = vpack.c.b16 %v311, %v310
        %v339 = vpack.c.b16 %v313, %v312
        %v340 = vpack.c.b16 %v315, %v314
        %v341 = vpack.c.b16 %v317, %v316
        %v342 = vpack.c.b16 %v319, %v318
        %v343 = vpack.c.b16 %v321, %v320
        %v344 = vpack.c.b16 %v323, %v322
        %v345 = vpack.c.b16 %v325, %v324
        %v346 = vpack.c.b16 %v327, %v326
        %v347 = vpack.c.b16 %v329, %v328
        %v348 = vpack.c.b16 %v331, %v330
        %v349 = vpack.c.b16 %v333, %v332
        %366 = vmatprep.subr.bf16.mxu0 0
        %367 = vmatpush1.bf16.msra.mxu0 %v341
        %368 = vmatprep.subr.bf16.mxu0 0
        %369 = vmatpush1.bf16.msra.mxu0 %v340
        %370 = vmatprep.subr.bf16.mxu0 0
        %371 = vmatpush1.bf16.msra.mxu0 %v339
        %372 = vmatprep.subr.bf16.mxu0 0
        %373 = vmatpush1.bf16.msra.mxu0 %v338
        %374 = vmatprep.subr.bf16.mxu0 0
        %375 = vmatpush1.bf16.msra.mxu0 %v337
        %376 = vmatprep.subr.bf16.mxu0 0
        %377 = vmatpush1.bf16.msra.mxu0 %v336
        %378 = vmatprep.subr.bf16.mxu0 0
        %379 = vmatpush1.bf16.msra.mxu0 %v335
        %380 = vmatprep.subr.bf16.mxu0 0
        %381 = vmatpush1.bf16.msra.mxu0 %v334
        %382 = vmatprep.subr.bf16.mxu0 0
        %383 = vmatpush2.bf16.msra.mxu0 %v349
        %384 = vmatprep.subr.bf16.mxu0 0
        %385 = vmatpush2.bf16.msra.mxu0 %v348
        %386 = vmatprep.subr.bf16.mxu0 0
        %387 = vmatpush2.bf16.msra.mxu0 %v347
        %388 = vmatprep.subr.bf16.mxu0 0
        %389 = vmatpush2.bf16.msra.mxu0 %v346
        %390 = vmatprep.subr.bf16.mxu0 0
        %391 = vmatpush2.bf16.msra.mxu0 %v345
        %392 = vmatprep.subr.bf16.mxu0 0
        %393 = vmatpush2.bf16.msra.mxu0 %v344
        %394 = vmatprep.subr.bf16.mxu0 0
        %395 = vmatpush2.bf16.msra.mxu0 %v343
        %396 = vmatprep.subr.bf16.mxu0 0
        %397 = vmatpush2.bf16.msra.mxu0 %v342
        %398 = vmatprep.mubr.bf16.mxu0 %v237
        %399 = vmatmul.mubr.bf16.gmra.mxu0 %v236
        %v400 = vpop.f32.mrf.mxu0
        %v401 = vadd.f32 0.0, %v400
        %v402 = vpop.f32.mrf.mxu0
        %v403 = vpop.f32.mrf.mxu0
        %v404 = vpop.f32.mrf.mxu0
        %405 = vdwg.mxu0
        %406 = vadd.xlane.f32.xlu0 %v401
        %v407 = vpop.xlane.xlu0 %406
        %v408 = vrcp.pop 128.0
        %v409 = vmul.f32 %v407, %v408
        %v410 = vsub.f32 %v401, %v409
        %v411 = vmul.f32 %v410, %v410
        %412 = vadd.xlane.f32.xlu0 %v411
        %v413 = vpop.xlane.xlu0 %412
        %v414 = vmul.f32 %v413, %v408
        %v415 = vld [vmem:[%s2] sm:$0x1]
        %v416 = vadd.f32 %v414, 1e-07
        %v417 = vrsqrt.pop %v416
        %v418 = vmul.f32 %v410, %v417
        %v420 = vlaneseq
        %v421 = vshrl.u32 %v420, 7
        %v422 = vsub.s32 0, %v421
        %v423 = vrot.slane %v415, %v422
        %v425 = vmul.f32 %v423, %v418
        %v426 = vld [vmem:[%s3] sm:$0x1]
        %v428 = vlaneseq
        %v429 = vshrl.u32 %v428, 7
        %v430 = vsub.s32 0, %v429
        %v431 = vrot.slane %v426, %v430
        %v433 = vadd.f32 %v425, %v431
        %434 = vset.pattern.permute.xlu0 3
        %435 = vperm.xlu0 %434, %v209
        %v436 = vpop.permute.xlu0 %435
        %v438 = vmul.f32 %v433, %v436
        %439 = vst [vmem:[%s203] sm:$0xff] %v438
        %s440 = sand.u32 %s116, 1
        %s441 = scalar_lea.sflag [#allocation4], %s440
        %s442 = sand.u32 %s116, 1
        %s443 = smul.addr %s442, 8
        %s444 = scalar_lea.vmem [#allocation5], %s443
        // Predicated region
        $region41: #{tpu_custom_call.1} parent=35 // pred_check
          %p445 = pneg %p126
        $region42: #{tpu_custom_call.1} parent=35 // pred_check_branch
          %447 = sbr.rel (%p445) target = $region44
        $region43: #{tpu_custom_call.1} parent=35 // pred_region
          %s449 = ssub.s32 128, 128
          %450 = vsyncadd %s441, %s449
          %s451 = smul.addr %s19, 128
          %s452 = scalar_lea.hbm %s4, %s451
          %s454 = sshll.u32 %s444, 4
          %s455 = int_to_ptr.vmem [resolvable:$true] %s454
          %457 = dma.vmem_to_hbm [thread:$0]  %s455, 128, %s452, %s441
        $region44: #{tpu_custom_call.1} parent=35 // pred_fallthru
          _
      $region36: #{tpu_custom_call.1} parent=5 // pred_fallthru
        _
      %p458 = scmp.le.s32.totalorder 2, %s14
      // Predicated region
      $region45: #{tpu_custom_call.1} parent=5 // pred_check
        %p459 = pneg %p458
      $region46: #{tpu_custom_call.1} parent=5 // pred_check_branch
        %461 = sbr.rel (%p459) target = $region48
      $region47: #{tpu_custom_call.1} parent=5 // pred_region
        %s462 = ssub.s32 %s14, 2
        // Predicated region
        $region49: #{tpu_custom_call.1} parent=47 // pred_check
          %p463 = pneg %p132
        $region50: #{tpu_custom_call.1} parent=47 // pred_check_branch
          %465 = sbr.rel (%p463) target = $region52
        $region51: #{tpu_custom_call.1} parent=47 // pred_region
          %s466 = sand.u32 %s117, 1
          %s467 = scalar_lea.sflag [#allocation4], %s466
          %s468 = sand.u32 %s117, 1
          %s469 = smul.addr %s468, 8
          %s470 = scalar_lea.vmem [#allocation5], %s469
          %471 = dma.done %s467, 128
        $region52: #{tpu_custom_call.1} parent=47 // pred_fallthru
          _
      $region48: #{tpu_custom_call.1} parent=5 // pred_fallthru
        _
    $region6: #{tpu_custom_call.1} parent=1 // loop_footer
      %s18 = sadd.s32 1, %s14
    $region7: #{tpu_custom_call.1} parent=1 // loop_footer_branch
      %13 = sbr.rel target = $region3
    $region8: #{tpu_custom_call.1} parent=1 // loop_exit
      _
    %472 = vsyncpa [#allocation3], 1
    %s473 = scalar_lea.sflag [#allocation3], 1
    %474 = vsyncpa %s473, 1
    %475 = vsyncpa [#allocation4], 1
    %s476 = scalar_lea.sflag [#allocation4], 1
    %477 = vsyncpa %s476, 1

// kernel: tpu_custom_call.1
$region0: #{tpu_custom_call.1}
  #allocation0 [shape = 'u32[]', space=smem, size = 0x4, offset = 0x4, fixed_abs, tag = 'smem constant byte address 0x4 - core index']
  #allocation1 [shape = 'u32[144,128]{1,0:T(1,128)}', space=vmem, size = 0x12000, scoped, tag = 'internal scratch']
  %s0 = inlined_call_operand.vmem [shape: s32[16,4], index: 0, kind: input, shape index: {}]
  %s1 = inlined_call_operand.hbm [shape: bf16[256,128], index: 1, kind: input, shape index: {}]
  %s2 = inlined_call_operand.vmem [shape: f32[1,128], index: 2, kind: input, shape index: {}]
  %s3 = inlined_call_operand.vmem [shape: f32[1,128], index: 3, kind: input, shape index: {}]
  %s4 = inlined_call_operand.hbm [shape: f32[16,128], index: 4, kind: output, shape index: {}]
  %s5 = sld [smem:[#allocation0]]
  $region53: #{tpu_custom_call.1} parent=0
    _
  %s7 = ssub.s32 1, %s5
  %s8 = scalar_select 0, %s7, %s5
  $region1: #{tpu_custom_call.1} parent=0
    #allocation2 [shape = 'u8[65536]{0}', space=vmem, size = 0x10000, scoped, tag = 'input window, operand 1, single buffered']
    #allocation3 [shape = 's32[2]{0}', space=sflag, size = 0x8, scoped, tag = 'scoped memory for tpu_custom_call.1']
    #allocation4 [shape = 's32[2]{0}', space=sflag, size = 0x8, scoped, tag = 'scoped memory for tpu_custom_call.1']
    #allocation5 [shape = 'u8[8192]{0}', space=vmem, size = 0x2000, scoped, tag = 'output window, operand 0']
    %9 = vsyncpa [#allocation3], 0
    %10 = vsyncpa [#allocation4], 0
    %s11 = scalar_lea.sflag [#allocation4], 1
    %12 = vsyncpa %s11, 0
    loop: start=0, step=1, limit=4
    $region2: #{tpu_custom_call.1} parent=1 // loop_pre_header
      _
    $region3: #{tpu_custom_call.1} parent=1 // loop_header
      %s14 = sphi 0, %s18
      %p15 = scmp.ge.s32.totalorder %s14, 4
      %s24 = sphi 0, %s26
      %s27 = sphi 0, %s24
      %s28 = sphi 0, %s27
      %s44 = sphi 0, %s28
      %s48 = sphi 0, %s48
      %s50 = sphi 0, %s48
      %s51 = sphi 0, %s50
      %s65 = sphi 0, %s51
      %s69 = sphi 0, %s69
      %s71 = sphi 0, %s69
      %s72 = sphi 0, %s71
      %s86 = sphi 0, %s72
      %s90 = sphi 0, %s90
      %s92 = sphi 0, %s90
      %s93 = sphi 0, %s92
      %s107 = sphi 0, %s93
      %s113 = sphi 0, %s115
      %s116 = sphi 0, %s113
      %s117 = sphi 0, %s116
      %s133 = sphi 0, %s117
    $region4: #{tpu_custom_call.1} parent=1 // loop_header_branch
      %17 = sbr.rel (%p15) target = $region8
    $region5: #{tpu_custom_call.1} parent=1 // loop_body
      %s19 = ssub.s32 %s14, 1
      %s20 = ssub.s32 %s14, 2
      %s21 = sadd.s32 %s14, 1
      %s22 = ssub.s32 %s14, %s21
      %p23 = scmp.eq.s32.totalorder %s22, 0
      %s25 = sadd.s32 %s24, 1
      %s26 = scalar_select %p23, %s24, %s25
      %p29 = pneg %p23
      %p30 = scmp.eq.s32.totalorder %s14, 1
      %p31 = por %p29, %p30
      %p32 = scmp.ne.s32.totalorder %s24, %s27
      %p33 = scmp.eq.s32.totalorder %s14, 0
      %p34 = por %p32, %p33
      %p35 = scmp.ne.s32.totalorder %s24, %s27
      %p36 = scmp.eq.s32.totalorder %s19, 1
      %p37 = por %p35, %p36
      %p38 = scmp.ne.s32.totalorder %s27, %s28
      %p39 = scmp.eq.s32.totalorder %s19, 0
      %p40 = por %p38, %p39
      %p41 = scmp.ne.s32.totalorder %s27, %s28
      %p42 = scmp.eq.s32.totalorder %s20, 1
      %p43 = por %p41, %p42
      %p45 = scmp.ne.s32.totalorder %s28, %s44
      %p46 = scmp.eq.s32.totalorder %s20, 0
      %p47 = por %p45, %p46
      %s49 = sadd.s32 %s48, 1
      %p52 = scmp.eq.s32.totalorder %s14, 1
      %p53 = scmp.ne.s32.totalorder %s48, %s50
      %p54 = scmp.eq.s32.totalorder %s14, 0
      %p55 = por %p53, %p54
      %p56 = scmp.ne.s32.totalorder %s48, %s50
      %p57 = scmp.eq.s32.totalorder %s19, 1
      %p58 = por %p56, %p57
      %p59 = scmp.ne.s32.totalorder %s50, %s51
      %p60 = scmp.eq.s32.totalorder %s19, 0
      %p61 = por %p59, %p60
      %p62 = scmp.ne.s32.totalorder %s50, %s51
      %p63 = scmp.eq.s32.totalorder %s20, 1
      %p64 = por %p62, %p63
      %p66 = scmp.ne.s32.totalorder %s51, %s65
      %p67 = scmp.eq.s32.totalorder %s20, 0
      %p68 = por %p66, %p67
      %s70 = sadd.s32 %s69, 1
      %p73 = scmp.eq.s32.totalorder %s14, 1
      %p74 = scmp.ne.s32.totalorder %s69, %s71
      %p75 = scmp.eq.s32.totalorder %s14, 0
      %p76 = por %p74, %p75
      %p77 = scmp.ne.s32.totalorder %s69, %s71
      %p78 = scmp.eq.s32.totalorder %s19, 1
      %p79 = por %p77, %p78
      %p80 = scmp.ne.s32.totalorder %s71, %s72
      %p81 = scmp.eq.s32.totalorder %s19, 0
      %p82 = por %p80, %p81
      %p83 = scmp.ne.s32.totalorder %s71, %s72
      %p84 = scmp.eq.s32.totalorder %s20, 1
      %p85 = por %p83, %p84
      %p87 = scmp.ne.s32.totalorder %s72, %s86
      %p88 = scmp.eq.s32.totalorder %s20, 0
      %p89 = por %p87, %p88
      %s91 = sadd.s32 %s90, 1
      %p94 = scmp.eq.s32.totalorder %s14, 1
      %p95 = scmp.ne.s32.totalorder %s90, %s92
      %p96 = scmp.eq.s32.totalorder %s14, 0
      %p97 = por %p95, %p96
      %p98 = scmp.ne.s32.totalorder %s90, %s92
      %p99 = scmp.eq.s32.totalorder %s19, 1
      %p100 = por %p98, %p99
      %p101 = scmp.ne.s32.totalorder %s92, %s93
      %p102 = scmp.eq.s32.totalorder %s19, 0
      %p103 = por %p101, %p102
      %p104 = scmp.ne.s32.totalorder %s92, %s93
      %p105 = scmp.eq.s32.totalorder %s20, 1
      %p106 = por %p104, %p105
      %p108 = scmp.ne.s32.totalorder %s93, %s107
      %p109 = scmp.eq.s32.totalorder %s20, 0
      %p110 = por %p108, %p109
      %s111 = ssub.s32 %s14, %s21
      %p112 = scmp.eq.s32.totalorder %s111, 0
      %s114 = sadd.s32 %s113, 1
      %s115 = scalar_select %p112, %s113, %s114
      %p118 = pneg %p112
      %p119 = scmp.eq.s32.totalorder %s14, 1
      %p120 = por %p118, %p119
      %p121 = scmp.ne.s32.totalorder %s113, %s116
      %p122 = scmp.eq.s32.totalorder %s14, 0
      %p123 = por %p121, %p122
      %p124 = scmp.ne.s32.totalorder %s113, %s116
      %p125 = scmp.eq.s32.totalorder %s19, 1
      %p126 = por %p124, %p125
      %p127 = scmp.ne.s32.totalorder %s116, %s117
      %p128 = scmp.eq.s32.totalorder %s19, 0
      %p129 = por %p127, %p128
      %p130 = scmp.ne.s32.totalorder %s116, %s117
      %p131 = scmp.eq.s32.totalorder %s20, 1
      %p132 = por %p130, %p131
      %p134 = scmp.ne.s32.totalorder %s117, %s133
      %p135 = scmp.eq.s32.totalorder %s20, 0
      %p136 = por %p134, %p135
      %p137 = scmp.le.s32.totalorder 1, %s14
      %p138 = scmp.lt.s32.totalorder %s14, 3
      %p139 = pnand %p137, %p138
      %p140 = pneg %p139
      // Predicated region
      $region9: #{tpu_custom_call.1} parent=5 // pred_check
        _
      $region10: #{tpu_custom_call.1} parent=5 // pred_check_branch
        %142 = sbr.rel (%p139) target = $region12
      $region11: #{tpu_custom_call.1} parent=5 // pred_region
        %s143 = ssub.s32 %s14, 1
        // Predicated region
        $region13: #{tpu_custom_call.1} parent=11 // pred_check
          %p144 = pneg %p61
        $region14: #{tpu_custom_call.1} parent=11 // pred_check_branch
          %146 = sbr.rel (%p144) target = $region16
        $region15: #{tpu_custom_call.1} parent=11 // pred_region
          %s148 = ssub.s32 2048, 2048
          %149 = vsyncadd [#allocation3], %s148
          %s150 = sshll.u32 [#allocation2], 4
          %s151 = int_to_ptr.vmem [resolvable:$true] %s150
          %156 = dma.hbm_to_vmem [thread:$0]  %s1, 2048, %s151, [#allocation3], 64, 64, 4
        $region16: #{tpu_custom_call.1} parent=11 // pred_fallthru
          _
        // Predicated region
        $region17: #{tpu_custom_call.1} parent=11 // pred_check
          %p157 = pneg %p82
        $region18: #{tpu_custom_call.1} parent=11 // pred_check_branch
          %159 = sbr.rel (%p157) target = $region20
        $region19: #{tpu_custom_call.1} parent=11 // pred_region
          _
        $region20: #{tpu_custom_call.1} parent=11 // pred_fallthru
          _
        // Predicated region
        $region21: #{tpu_custom_call.1} parent=11 // pred_check
          %p160 = pneg %p103
        $region22: #{tpu_custom_call.1} parent=11 // pred_check_branch
          %162 = sbr.rel (%p160) target = $region24
        $region23: #{tpu_custom_call.1} parent=11 // pred_region
          _
        $region24: #{tpu_custom_call.1} parent=11 // pred_fallthru
          _
      $region12: #{tpu_custom_call.1} parent=5 // pred_fallthru
        _
      %p163 = scmp.lt.s32.totalorder %s14, 2
      // Predicated region
      $region25: #{tpu_custom_call.1} parent=5 // pred_check
        %p164 = pneg %p163
      $region26: #{tpu_custom_call.1} parent=5 // pred_check_branch
        %166 = sbr.rel (%p164) target = $region28
      $region27: #{tpu_custom_call.1} parent=5 // pred_region
        // Predicated region
        $region29: #{tpu_custom_call.1} parent=27 // pred_check
          %p167 = pneg %p34
        $region30: #{tpu_custom_call.1} parent=27 // pred_check_branch
          %169 = sbr.rel (%p167) target = $region32
        $region31: #{tpu_custom_call.1} parent=27 // pred_region
          %p170 = scmp.lt.s32.totalorder %s14, 1
          %s171 = scalar_select %p170, %s14, 1
          %s172 = smul.addr %s171, 8
          %s173 = scalar_lea.vmem %s0, %s172
        $region32: #{tpu_custom_call.1} parent=27 // pred_fallthru
          _
      $region28: #{tpu_custom_call.1} parent=5 // pred_fallthru
        _
      %p174 = scmp.le.s32.totalorder 1, %s14
      %p175 = scmp.lt.s32.totalorder %s14, 3
      %p176 = pnand %p174, %p175
      %p177 = pneg %p176
      // Predicated region
      $region33: #{tpu_custom_call.1} parent=5 // pred_check
        _
      $region34: #{tpu_custom_call.1} parent=5 // pred_check_branch
        %179 = sbr.rel (%p176) target = $region36
      $region35: #{tpu_custom_call.1} parent=5 // pred_region
        %s180 = ssub.s32 %s14, 1
        // Predicated region
        $region37: #{tpu_custom_call.1} parent=35 // pred_check
          %p181 = pneg %p61
        $region38: #{tpu_custom_call.1} parent=35 // pred_check_branch
          %183 = sbr.rel (%p181) target = $region40
        $region39: #{tpu_custom_call.1} parent=35 // pred_region
          %184 = dma.done [#allocation3], 2048
        $region40: #{tpu_custom_call.1} parent=35 // pred_fallthru
          _
        %p185 = scmp.lt.s32.totalorder %s19, 1
        %s186 = scalar_select %p185, %s19, 1
        %s187 = smul.addr %s186, 8
        %s188 = scalar_lea.vmem %s0, %s187
        %p189 = pneg %p40
        %p190 = pneg %p37
        %p191 = pneg %p61
        %p192 = pneg %p58
        %p193 = pneg %p82
        %p194 = pneg %p79
        %p195 = pneg %p103
        %p196 = pneg %p100
        %p197 = pneg %p129
        %p198 = pneg %p126
        %s199 = sand.u32 %s116, 1
        %s200 = scalar_lea.sflag [#allocation4], %s199
        %s201 = sand.u32 %s116, 1
        %s202 = smul.addr %s201, 8
        %s203 = scalar_lea.vmem [#allocation5], %s202
        %p204 = scmp.lt.s32.totalorder %s19, 1
        %s205 = scalar_select %p204, %s19, 1
        %s206 = smul.addr %s205, 8
        %s207 = scalar_lea.vmem %s0, %s206
        %v209 = vld [vmem:[%s207] sm:$0xff]
        %v210 = vlaneseq
        %v211 = vand.u32 %v210, 127
        %v212 = vadd.s32 %v211, 128
        %213 = vset.pattern.permute.xlu0 0
        %214 = vperm.xlu0 %213, %v209
        %v215 = vpop.permute.xlu0 %214
        %vm216 = vcmp.eq.s32.totalorder %v211, %v215
        %vm217 = vcmp.eq.s32.totalorder %v212, %v215
        %218 = vset.pattern.permute.xlu0 1
        %219 = vperm.xlu0 %218, %v209
        %v220 = vpop.permute.xlu0 %219
        %vm221 = vcmp.eq.s32.totalorder %v211, %v220
        %vm222 = vcmp.eq.s32.totalorder %v212, %v220
        %vm223 = vmor %vm216, %vm221
        %vm224 = vmor %vm217, %vm222
        %225 = vset.pattern.permute.xlu0 2
        %226 = vperm.xlu0 %225, %v209
        %v227 = vpop.permute.xlu0 %226
        %vm228 = vcmp.eq.s32.totalorder %v211, %v227
        %vm229 = vcmp.eq.s32.totalorder %v212, %v227
        %vm230 = vmor %vm223, %vm228
        %vm231 = vmor %vm224, %vm229
        %v232 = vsel %vm230, 1, 0
        %v233 = vsel %vm231, 1, 0
        %v234 = vcvt.s32.f32 %v232
        %v235 = vcvt.s32.f32 %v233
        %v236 = vpack.c.bf16 %v234, %v234
        %v237 = vpack.c.bf16 %v235, %v235
        %v238 = vld [vmem:[#allocation2] sm:$0xf]
        %v239 = vld [vmem:[#allocation2 + $0x4] sm:$0xf]
        %v240 = vld [vmem:[#allocation2 + $0x8] sm:$0xf]
        %v241 = vld [vmem:[#allocation2 + $0xc] sm:$0xf]
        %v242 = vld [vmem:[#allocation2 + $0x10] sm:$0xf]
        %v243 = vld [vmem:[#allocation2 + $0x14] sm:$0xf]
        %v244 = vld [vmem:[#allocation2 + $0x18] sm:$0xf]
        %v245 = vld [vmem:[#allocation2 + $0x1c] sm:$0xf]
        %v246 = vld [vmem:[#allocation2 + $0x20] sm:$0xf]
        %v247 = vld [vmem:[#allocation2 + $0x24] sm:$0xf]
        %v248 = vld [vmem:[#allocation2 + $0x28] sm:$0xf]
        %v249 = vld [vmem:[#allocation2 + $0x2c] sm:$0xf]
        %v250 = vld [vmem:[#allocation2 + $0x30] sm:$0xf]
        %v251 = vld [vmem:[#allocation2 + $0x34] sm:$0xf]
        %v252 = vld [vmem:[#allocation2 + $0x38] sm:$0xf]
        %v253 = vld [vmem:[#allocation2 + $0x3c] sm:$0xf]
        %v254 = vld [vmem:[#allocation2 + $0x40] sm:$0xf]
        %v255 = vld [vmem:[#allocation2 + $0x44] sm:$0xf]
        %v256 = vld [vmem:[#allocation2 + $0x48] sm:$0xf]
        %v257 = vld [vmem:[#allocation2 + $0x4c] sm:$0xf]
        %v258 = vld [vmem:[#allocation2 + $0x50] sm:$0xf]
        %v259 = vld [vmem:[#allocation2 + $0x54] sm:$0xf]
        %v260 = vld [vmem:[#allocation2 + $0x58] sm:$0xf]
        %v261 = vld [vmem:[#allocation2 + $0x5c] sm:$0xf]
        %v262 = vld [vmem:[#allocation2 + $0x60] sm:$0xf]
        %v263 = vld [vmem:[#allocation2 + $0x64] sm:$0xf]
        %v264 = vld [vmem:[#allocation2 + $0x68] sm:$0xf]
        %v265 = vld [vmem:[#allocation2 + $0x6c] sm:$0xf]
        %v266 = vld [vmem:[#allocation2 + $0x70] sm:$0xf]
        %v267 = vld [vmem:[#allocation2 + $0x74] sm:$0xf]
        %v268 = vld [vmem:[#allocation2 + $0x78] sm:$0xf]
        %v269 = vld [vmem:[#allocation2 + $0x7c] sm:$0xf]
        %v302 = vunpack.c.l.b16 %v238
        %v303 = vunpack.c.l.b16 %v239
        %v304 = vunpack.c.l.b16 %v240
        %v305 = vunpack.c.l.b16 %v241
        %v306 = vunpack.c.l.b16 %v242
        %v307 = vunpack.c.l.b16 %v243
        %v308 = vunpack.c.l.b16 %v244
        %v309 = vunpack.c.l.b16 %v245
        %v310 = vunpack.c.l.b16 %v246
        %v311 = vunpack.c.l.b16 %v247
        %v312 = vunpack.c.l.b16 %v248
        %v313 = vunpack.c.l.b16 %v249
        %v314 = vunpack.c.l.b16 %v250
        %v315 = vunpack.c.l.b16 %v251
        %v316 = vunpack.c.l.b16 %v252
        %v317 = vunpack.c.l.b16 %v253
        %v318 = vunpack.c.l.b16 %v254
        %v319 = vunpack.c.l.b16 %v255
        %v320 = vunpack.c.l.b16 %v256
        %v321 = vunpack.c.l.b16 %v257
        %v322 = vunpack.c.l.b16 %v258
        %v323 = vunpack.c.l.b16 %v259
        %v324 = vunpack.c.l.b16 %v260
        %v325 = vunpack.c.l.b16 %v261
        %v326 = vunpack.c.l.b16 %v262
        %v327 = vunpack.c.l.b16 %v263
        %v328 = vunpack.c.l.b16 %v264
        %v329 = vunpack.c.l.b16 %v265
        %v330 = vunpack.c.l.b16 %v266
        %v331 = vunpack.c.l.b16 %v267
        %v332 = vunpack.c.l.b16 %v268
        %v333 = vunpack.c.l.b16 %v269
        %v334 = vpack.c.b16 %v303, %v302
        %v335 = vpack.c.b16 %v305, %v304
        %v336 = vpack.c.b16 %v307, %v306
        %v337 = vpack.c.b16 %v309, %v308
        %v338 = vpack.c.b16 %v311, %v310
        %v339 = vpack.c.b16 %v313, %v312
        %v340 = vpack.c.b16 %v315, %v314
        %v341 = vpack.c.b16 %v317, %v316
        %v342 = vpack.c.b16 %v319, %v318
        %v343 = vpack.c.b16 %v321, %v320
        %v344 = vpack.c.b16 %v323, %v322
        %v345 = vpack.c.b16 %v325, %v324
        %v346 = vpack.c.b16 %v327, %v326
        %v347 = vpack.c.b16 %v329, %v328
        %v348 = vpack.c.b16 %v331, %v330
        %v349 = vpack.c.b16 %v333, %v332
        %366 = vmatprep.subr.bf16.mxu0 0
        %367 = vmatpush1.bf16.msra.mxu0 %v341
        %368 = vmatprep.subr.bf16.mxu0 0
        %369 = vmatpush1.bf16.msra.mxu0 %v340
        %370 = vmatprep.subr.bf16.mxu0 0
        %371 = vmatpush1.bf16.msra.mxu0 %v339
        %372 = vmatprep.subr.bf16.mxu0 0
        %373 = vmatpush1.bf16.msra.mxu0 %v338
        %374 = vmatprep.subr.bf16.mxu0 0
        %375 = vmatpush1.bf16.msra.mxu0 %v337
        %376 = vmatprep.subr.bf16.mxu0 0
        %377 = vmatpush1.bf16.msra.mxu0 %v336
        %378 = vmatprep.subr.bf16.mxu0 0
        %379 = vmatpush1.bf16.msra.mxu0 %v335
        %380 = vmatprep.subr.bf16.mxu0 0
        %381 = vmatpush1.bf16.msra.mxu0 %v334
        %382 = vmatprep.subr.bf16.mxu0 0
        %383 = vmatpush2.bf16.msra.mxu0 %v349
        %384 = vmatprep.subr.bf16.mxu0 0
        %385 = vmatpush2.bf16.msra.mxu0 %v348
        %386 = vmatprep.subr.bf16.mxu0 0
        %387 = vmatpush2.bf16.msra.mxu0 %v347
        %388 = vmatprep.subr.bf16.mxu0 0
        %389 = vmatpush2.bf16.msra.mxu0 %v346
        %390 = vmatprep.subr.bf16.mxu0 0
        %391 = vmatpush2.bf16.msra.mxu0 %v345
        %392 = vmatprep.subr.bf16.mxu0 0
        %393 = vmatpush2.bf16.msra.mxu0 %v344
        %394 = vmatprep.subr.bf16.mxu0 0
        %395 = vmatpush2.bf16.msra.mxu0 %v343
        %396 = vmatprep.subr.bf16.mxu0 0
        %397 = vmatpush2.bf16.msra.mxu0 %v342
        %398 = vmatprep.mubr.bf16.mxu0 %v237
        %399 = vmatmul.mubr.bf16.gmra.mxu0 %v236
        %v400 = vpop.f32.mrf.mxu0
        %v401 = vadd.f32 0.0, %v400
        %v402 = vpop.f32.mrf.mxu0
        %v403 = vpop.f32.mrf.mxu0
        %v404 = vpop.f32.mrf.mxu0
        %405 = vdwg.mxu0
        %406 = vadd.xlane.f32.xlu0 %v401
        %v407 = vpop.xlane.xlu0 %406
        %v408 = vrcp.pop 128.0
        %v409 = vmul.f32 %v407, %v408
        %v410 = vsub.f32 %v401, %v409
        %v411 = vmul.f32 %v410, %v410
        %412 = vadd.xlane.f32.xlu0 %v411
        %v413 = vpop.xlane.xlu0 %412
        %v414 = vmul.f32 %v413, %v408
        %v415 = vld [vmem:[%s2] sm:$0x1]
        %v416 = vadd.f32 %v414, 1e-07
        %v417 = vrsqrt.pop %v416
        %v418 = vmul.f32 %v410, %v417
        %v420 = vlaneseq
        %v421 = vshrl.u32 %v420, 7
        %v422 = vsub.s32 0, %v421
        %v423 = vrot.slane %v415, %v422
        %v425 = vmul.f32 %v423, %v418
        %v426 = vld [vmem:[%s3] sm:$0x1]
        %v428 = vlaneseq
        %v429 = vshrl.u32 %v428, 7
        %v430 = vsub.s32 0, %v429
        %v431 = vrot.slane %v426, %v430
        %v433 = vadd.f32 %v425, %v431
        %434 = vset.pattern.permute.xlu0 3
        %435 = vperm.xlu0 %434, %v209
        %v436 = vpop.permute.xlu0 %435
        %v438 = vmul.f32 %v433, %v436
        %439 = vst [vmem:[%s203] sm:$0xff] %v438
        %s440 = sand.u32 %s116, 1
        %s441 = scalar_lea.sflag [#allocation4], %s440
        %s442 = sand.u32 %s116, 1
        %s443 = smul.addr %s442, 8
        %s444 = scalar_lea.vmem [#allocation5], %s443
        // Predicated region
        $region41: #{tpu_custom_call.1} parent=35 // pred_check
          %p445 = pneg %p126
        $region42: #{tpu_custom_call.1} parent=35 // pred_check_branch
          %447 = sbr.rel (%p445) target = $region44
        $region43: #{tpu_custom_call.1} parent=35 // pred_region
          %s449 = ssub.s32 128, 128
          %450 = vsyncadd %s441, %s449
          %s451 = smul.addr %s19, 128
          %s452 = scalar_lea.hbm %s4, %s451
          %s454 = sshll.u32 %s444, 4
          %s455 = int_to_ptr.vmem [resolvable:$true] %s454
          %457 = dma.vmem_to_hbm [thread:$0]  %s455, 128, %s452, %s441
        $region44: #{tpu_custom_call.1} parent=35 // pred_fallthru
          _
      $region36: #{tpu_custom_call.1} parent=5 // pred_fallthru
        _
      %p458 = scmp.le.s32.totalorder 2, %s14
      // Predicated region
      $region45: #{tpu_custom_call.1} parent=5 // pred_check
        %p459 = pneg %p458
      $region46: #{tpu_custom_call.1} parent=5 // pred_check_branch
        %461 = sbr.rel (%p459) target = $region48
      $region47: #{tpu_custom_call.1} parent=5 // pred_region
        %s462 = ssub.s32 %s14, 2
        // Predicated region
        $region49: #{tpu_custom_call.1} parent=47 // pred_check
          %p463 = pneg %p132
        $region50: #{tpu_custom_call.1} parent=47 // pred_check_branch
          %465 = sbr.rel (%p463) target = $region52
        $region51: #{tpu_custom_call.1} parent=47 // pred_region
          %s466 = sand.u32 %s117, 1
          %s467 = scalar_lea.sflag [#allocation4], %s466
          %s468 = sand.u32 %s117, 1
          %s469 = smul.addr %s468, 8
          %s470 = scalar_lea.vmem [#allocation5], %s469
          %471 = dma.done %s467, 128
        $region52: #{tpu_custom_call.1} parent=47 // pred_fallthru
          _
      $region48: #{tpu_custom_call.1} parent=5 // pred_fallthru
        _
    $region6: #{tpu_custom_call.1} parent=1 // loop_footer
      %s18 = sadd.s32 1, %s14
    $region7: #{tpu_custom_call.1} parent=1 // loop_footer_branch
      %13 = sbr.rel target = $region3
    $region8: #{tpu_custom_call.1} parent=1 // loop_exit
      _
    %472 = vsyncpa [#allocation3], 1
    %s473 = scalar_lea.sflag [#allocation3], 1
    %474 = vsyncpa %s473, 1
    %475 = vsyncpa [#allocation4], 1
    %s476 = scalar_lea.sflag [#allocation4], 1
    %477 = vsyncpa %s476, 1

</llo_original>
